<compile_context>
chip_gen: v7x
topology: tpu7x:2x2x1
jax: 0.10.0
libtpu: 0.0.40
codegen_flags: <defaults>
</compile_context>

<pallas_src>
import numpy as np
import jax
import jax.numpy as jnp
from jax import lax
from jax.experimental import pallas as pl
from jax.experimental.pallas import tpu as pltpu


def _conv1x1(t, w, use_mxu):
    """t: (cin, L) f32, w: (cout, cin) -> (cout, L) f32."""
    if use_mxu:
        # w is pre-cast to bf16 on the wrapper side; cast the activation once here.
        return jnp.dot(w, t.astype(jnp.bfloat16), preferred_element_type=jnp.float32)
    # Tiny channel counts: unrolled outer-product MACs on the VPU.
    cout, cin = w.shape
    acc = w[:, 0:1] * t[0:1, :]
    for ci in range(1, cin):
        acc = acc + w[:, ci:ci + 1] * t[ci:ci + 1, :]
    return acc


def _make_kernel(W, Th, use_mxu1, use_mxu3):
    L = Th * W                 # lanes per band
    Lext = L + 2 * W + 2       # [guard | halo row above | band | halo row below | guard]

    def kernel(x_ref, halo_ref, mask_ref,
               s1_ref, t1_ref, w1_ref,
               s2_ref, t2_ref, w2_ref,
               s3_ref, t3_ref, w3_ref, b3_ref,
               out_ref):
        Cin = x_ref.shape[0]

        x = x_ref[...]                       # (Cin, L)   f32
        h = halo_ref[...]                    # (2, Cin, W) f32
        m = mask_ref[...]                    # (4, Lext)  f32 (resident constants)

        # Extended band: one guard lane, halo row above, the band, halo row below,
        # one guard lane.  Built once per step.
        guard = jnp.zeros((Cin, 1), jnp.float32)
        xe = jnp.concatenate([guard, h[0], x, h[1], guard], axis=1)   # (Cin, Lext)

        # bn1 + relu, conv1 (1x1), bn2 + relu -- all pointwise, applied to the
        # halo rows as well (cheap: 2 extra rows).
        t = jnp.maximum(xe * s1_ref[...] + t1_ref[...], 0.0)
        t = _conv1x1(t, w1_ref[...], use_mxu1)                        # (P, Lext) f32
        t = jnp.maximum(t * s2_ref[...] + t2_ref[...], 0.0)

        # conv2 zero padding: halo rows sitting at the image top/bottom must be
        # zero *after* the pointwise prologue (they are conv2's padded input).
        b = pl.program_id(1)
        top_valid = jnp.where(b > 0, 1.0, 0.0)
        bot_valid = jnp.where(b < pl.num_programs(1) - 1, 1.0, 0.0)
        keep = 1.0 - (1.0 - top_valid) * m[2:3, :] - (1.0 - bot_valid) * m[3:4, :]
        t = t * keep

        # conv2: 3x3 depthwise, stride 1, pad 1.  One pre-masked copy per
        # horizontal direction; every tap is a static lane slice of length L.
        t_m = t * m[0:1, :]        # feeds the three dx = -1 taps
        t_p = t * m[1:2, :]        # feeds the three dx = +1 taps
        w2 = w2_ref[...]           # (P, 9), row-major taps

        def tap(src, dy, dx):
            s = (dy + 1) * W + 1 + dx
            return src[:, s:s + L]

        acc = tap(t, 0, 0) * w2[:, 4:5]                  # center tap initializes acc
        acc = acc + tap(t_m, -1, -1) * w2[:, 0:1]
        acc = acc + tap(t,   -1,  0) * w2[:, 1:2]
        acc = acc + tap(t_p, -1,  1) * w2[:, 2:3]
        acc = acc + tap(t_m,  0, -1) * w2[:, 3:4]
        acc = acc + tap(t_p,  0,  1) * w2[:, 5:6]
        acc = acc + tap(t_m,  1, -1) * w2[:, 6:7]
        acc = acc + tap(t,    1,  0) * w2[:, 7:8]
        acc = acc + tap(t_p,  1,  1) * w2[:, 8:9]        # (P, L), b2 folded into t3

        # bn3 + relu, conv3 (1x1) + b3, residual add.
        t = jnp.maximum(acc * s3_ref[...] + t3_ref[...], 0.0)
        y = _conv1x1(t, w3_ref[...], use_mxu3) + b3_ref[...]          # (Cout, L)
        out_ref[...] = y + x

    return kernel


def _choose_band_rows(H, W, target_lanes=2048):
    """Largest row-band height Th dividing H with Th*W <= target and %128 == 0."""
    if H * W <= target_lanes:
        return H
    for th in range(H - 1, 0, -1):
        if H % th == 0 and th * W <= target_lanes and (th * W) % 128 == 0:
            return th
    return H


def bottleneck_forward(x_nchw, params, band_rows=None):
    x = x_nchw.astype(jnp.float32)
    N, Cin, H, W = x.shape
    Cout, planes = params['w3'].shape
    assert Cout == Cin, "residual add requires inplanes == 2*planes (stride=1, downsample=None)"
    # TODO(synk): stride > 1 / non-None downsample branch not implemented.

    Th = band_rows if band_rows is not None else _choose_band_rows(H, W)
    assert H % Th == 0, "band_rows must divide H"
    assert Th == H or (Th * W) % 128 == 0, "band lanes (Th*W) must be a multiple of 128 (or one band)"
    nb = H // Th
    L = Th * W
    Lext = L + 2 * W + 2

    # Band-major view of the input: free reshape (merges contiguous trailing dims).
    x2 = x.reshape(N, Cin, H * W)

    # Halo rows (one above / one below each band).  Border values are clamped
    # copies; the kernel zeroes them post-prologue (conv2 zero padding).
    ia = np.clip(np.arange(nb) * Th - 1, 0, H - 1)
    ib = np.clip(np.arange(nb) * Th + Th, 0, H - 1)
    above = jnp.transpose(x[:, :, ia, :], (0, 2, 1, 3))      # (N, nb, Cin, W)
    below = jnp.transpose(x[:, :, ib, :], (0, 2, 1, 3))
    halo = jnp.stack([above, below], axis=2)                 # (N, nb, 2, Cin, W)

    # Precomputed lane masks, resident in VMEM across all grid steps:
    #   row0: zero where extended-col == W-1 (or guard)   -> dx = -1 taps
    #   row1: zero where extended-col == 0   (or guard)   -> dx = +1 taps
    #   row2/3: top / bottom halo-row indicators (image-edge zero padding)
    j = np.arange(Lext)
    ecol = (j - 1) % W
    g = (j == 0) | (j == Lext - 1)
    masks = jnp.asarray(np.stack([
        np.where(g | (ecol == W - 1), 0.0, 1.0),
        np.where(g | (ecol == 0), 0.0, 1.0),
        ((j >= 1) & (j <= W)).astype(np.float32),
        ((j >= L + W + 1) & (j <= L + 2 * W)).astype(np.float32),
    ]), jnp.float32)                                         # (4, Lext)

    # MXU for the 1x1 convs once the contraction dim is >= 16; pre-cast those
    # weights to bf16 host-side (halves their DMA, no per-step cast sweeps).
    use_mxu1 = Cin >= 16
    use_mxu3 = planes >= 16
    w1 = params['w1'].astype(jnp.bfloat16) if use_mxu1 else params['w1']
    w3 = params['w3'].astype(jnp.bfloat16) if use_mxu3 else params['w3']

    args = (params['s1'], params['t1'], w1,
            params['s2'], params['t2'], params['w2'],
            params['s3'], params['t3'], w3, params['b3'])

    def full_spec(a):
        nd = a.ndim
        return pl.BlockSpec(a.shape, lambda n, b, nd=nd: (0,) * nd)

    in_specs = (
        [pl.BlockSpec((None, Cin, L), lambda n, b: (n, 0, b)),
         pl.BlockSpec((None, None, 2, Cin, W), lambda n, b: (n, b, 0, 0, 0)),
         pl.BlockSpec((4, Lext), lambda n, b: (0, 0))]
        + [full_spec(a) for a in args])
    out_spec = pl.BlockSpec((None, Cout, L), lambda n, b: (n, 0, b))

    out = pl.pallas_call(
        _make_kernel(W, Th, use_mxu1, use_mxu3),
        out_shape=jax.ShapeDtypeStruct((N, Cout, H * W), jnp.float32),
        grid_spec=pltpu.PrefetchScalarGridSpec(
            num_scalar_prefetch=0,
            grid=(N, nb),                    # batch x row-band, both independent
            in_specs=in_specs,
            out_specs=out_spec),
        compiler_params=pltpu.CompilerParams(
            dimension_semantics=("parallel", "parallel"),
            vmem_limit_bytes=48 * 1024 * 1024),
    )(x2, halo, masks, *args)
    return out.reshape(N, Cout, H, W)        # free reshape back to NCHW


def make_params(key, inplanes, planes, eps=1e-5):
    ks = jax.random.split(key, 18)

    def bn_fold(k0, c):
        g = 1.0 + 0.1 * jax.random.normal(ks[k0], (c,), jnp.float32)
        b = 0.1 * jax.random.normal(ks[k0 + 1], (c,), jnp.float32)
        rm = 0.1 * jax.random.normal(ks[k0 + 2], (c,), jnp.float32)
        rv = 1.0 + 0.1 * jax.random.uniform(ks[k0 + 3], (c,), jnp.float32)
        scale = g / jnp.sqrt(rv + eps)
        shift = b - rm * scale
        return scale, shift

    s1, t1 = bn_fold(0, inplanes)
    s2, t2 = bn_fold(4, planes)
    s3, t3 = bn_fold(8, planes)

    w1 = 0.2 * jax.random.normal(ks[12], (planes, inplanes, 1, 1), jnp.float32)    # OIHW
    b1 = 0.1 * jax.random.normal(ks[13], (planes,), jnp.float32)
    w2 = 0.2 * jax.random.normal(ks[14], (planes, 1, 3, 3), jnp.float32)           # depthwise OIHW
    b2 = 0.1 * jax.random.normal(ks[15], (planes,), jnp.float32)
    w3 = 0.2 * jax.random.normal(ks[16], (planes * 2, planes, 1, 1), jnp.float32)  # OIHW
    b3 = 0.1 * jax.random.normal(ks[17], (planes * 2,), jnp.float32)

    # Kernel-ready params: channels-major column vectors; conv1/conv2 biases folded
    # into the following BN shift (b1 -> t2', b2 -> t3'); only b3 stays explicit.
    params = dict(
        s1=s1.reshape(-1, 1), t1=t1.reshape(-1, 1),
        w1=w1[:, :, 0, 0],                                   # (planes, inplanes)
        s2=s2.reshape(-1, 1), t2=(t2 + s2 * b1).reshape(-1, 1),
        w2=w2[:, 0].reshape(planes, 9),                      # (planes, 9), row-major taps
        s3=s3.reshape(-1, 1), t3=(t3 + s3 * b2).reshape(-1, 1),
        w3=w3[:, :, 0, 0],                                   # (2*planes, planes)
        b3=b3.reshape(-1, 1),
    )
    raw = dict(w1=w1, b1=b1, w2=w2, b2=b2, w3=w3, b3=b3,
               s1=s1, t1=t1, s2=s2, t2=t2, s3=s3, t3=t3)
    return params, raw


def ref_forward(x, raw, planes):
    """Pure-JAX NCHW reference (lax convolutions) for validation."""
    def bcast(v):
        return v.reshape(1, -1, 1, 1)
    dn = ('NCHW', 'OIHW', 'NCHW')
    out = jnp.maximum(x * bcast(raw['s1']) + bcast(raw['t1']), 0.0)
    out = lax.conv_general_dilated(out, raw['w1'], (1, 1), 'VALID',
                                   dimension_numbers=dn) + bcast(raw['b1'])
    out = jnp.maximum(out * bcast(raw['s2']) + bcast(raw['t2']), 0.0)
    out = lax.conv_general_dilated(out, raw['w2'], (1, 1), ((1, 1), (1, 1)),
                                   dimension_numbers=dn,
                                   feature_group_count=planes) + bcast(raw['b2'])
    out = jnp.maximum(out * bcast(raw['s3']) + bcast(raw['t3']), 0.0)
    out = lax.conv_general_dilated(out, raw['w3'], (1, 1), 'VALID',
                                   dimension_numbers=dn) + bcast(raw['b3'])
    return out + x


if __name__ == "__main__":
    key = jax.random.PRNGKey(0)

    def run_case(k, N, inplanes, planes, H, W, band_rows, tol):
        kx, kp = jax.random.split(k)
        x = jax.random.normal(kx, (N, inplanes, H, W), jnp.float32)
        params, raw = make_params(kp, inplanes, planes)
        out = jax.block_until_ready(bottleneck_forward(x, params, band_rows=band_rows))
        ref = ref_forward(x, raw, planes)
        assert out.shape == (N, 2 * planes, H, W)
        err = float(jnp.max(jnp.abs(out - ref)))
        assert err < tol, f"mismatch vs reference: {err} (tol {tol})"

    k1, k2 = jax.random.split(key)
    # Small config: f32 VPU 1x1 path, 2 row bands -> exercises the halo logic.
    run_case(k1, N=2, inplanes=8, planes=4, H=16, W=16, band_rows=8, tol=1e-3)
    # Wider config: exercises the bf16 MXU 1x1 path (looser tol: bf16 inputs).
    run_case(k2, N=1, inplanes=32, planes=16, H=16, W=16, band_rows=8, tol=1e-1)
    print("KERNEL_OK")
</pallas_src>

<mosaic_0001>
module attributes {stable_mosaic.version = 11 : i64} {
  func.func @kernel(%arg0: i32, %arg1: i32, %arg2: memref<1x8x128xf32, #tpu.memory_space<vmem>>, %arg3: memref<1x1x2x8x16xf32, #tpu.memory_space<vmem>>, %arg4: memref<4x162xf32, #tpu.memory_space<vmem>>, %arg5: memref<8x1xf32, #tpu.memory_space<vmem>>, %arg6: memref<8x1xf32, #tpu.memory_space<vmem>>, %arg7: memref<4x8xf32, #tpu.memory_space<vmem>>, %arg8: memref<4x1xf32, #tpu.memory_space<vmem>>, %arg9: memref<4x1xf32, #tpu.memory_space<vmem>>, %arg10: memref<4x9xf32, #tpu.memory_space<vmem>>, %arg11: memref<4x1xf32, #tpu.memory_space<vmem>>, %arg12: memref<4x1xf32, #tpu.memory_space<vmem>>, %arg13: memref<8x4xf32, #tpu.memory_space<vmem>>, %arg14: memref<8x1xf32, #tpu.memory_space<vmem>>, %arg15: memref<1x8x128xf32, #tpu.memory_space<vmem>>) attributes {dimension_semantics = [#tpu.dimension_semantics<parallel>, #tpu.dimension_semantics<parallel>], iteration_bounds = array<i64: 2, 2>, scalar_prefetch = 0 : i64, scratch_operands = 0 : i64, tpu.core_type = #tpu.core_type<tc>, window_params = [{transform_indices = @transform_0, window_bounds = array<i64: 1, 8, 128>}, {transform_indices = @transform_1, window_bounds = array<i64: 1, 1, 2, 8, 16>}, {pipeline_mode = #tpu.pipeline_mode<synchronous>, transform_indices = @transform_2, window_bounds = array<i64: 4, 162>}, {pipeline_mode = #tpu.pipeline_mode<synchronous>, transform_indices = @transform_3, window_bounds = array<i64: 8, 1>}, {pipeline_mode = #tpu.pipeline_mode<synchronous>, transform_indices = @transform_4, window_bounds = array<i64: 8, 1>}, {pipeline_mode = #tpu.pipeline_mode<synchronous>, transform_indices = @transform_5, window_bounds = array<i64: 4, 8>}, {pipeline_mode = #tpu.pipeline_mode<synchronous>, transform_indices = @transform_6, window_bounds = array<i64: 4, 1>}, {pipeline_mode = #tpu.pipeline_mode<synchronous>, transform_indices = @transform_7, window_bounds = array<i64: 4, 1>}, {pipeline_mode = #tpu.pipeline_mode<synchronous>, transform_indices = @transform_8, window_bounds = array<i64: 4, 9>}, {pipeline_mode = #tpu.pipeline_mode<synchronous>, transform_indices = @transform_9, window_bounds = array<i64: 4, 1>}, {pipeline_mode = #tpu.pipeline_mode<synchronous>, transform_indices = @transform_10, window_bounds = array<i64: 4, 1>}, {pipeline_mode = #tpu.pipeline_mode<synchronous>, transform_indices = @transform_11, window_bounds = array<i64: 8, 4>}, {pipeline_mode = #tpu.pipeline_mode<synchronous>, transform_indices = @transform_12, window_bounds = array<i64: 8, 1>}, {transform_indices = @transform_13, window_bounds = array<i64: 1, 8, 128>}]} {
    %c0 = arith.constant 0 : index
    %c0_0 = arith.constant 0 : index
    %c0_1 = arith.constant 0 : index
    %0 = vector.load %arg2[%c0, %c0_0, %c0_1] : memref<1x8x128xf32, #tpu.memory_space<vmem>>, vector<1x8x128xf32>
    %1 = vector.shape_cast %0 : vector<1x8x128xf32> to vector<8x128xf32>
    %c0_2 = arith.constant 0 : index
    %c0_3 = arith.constant 0 : index
    %c0_4 = arith.constant 0 : index
    %c0_5 = arith.constant 0 : index
    %c0_6 = arith.constant 0 : index
    %2 = vector.load %arg3[%c0_2, %c0_3, %c0_4, %c0_5, %c0_6] : memref<1x1x2x8x16xf32, #tpu.memory_space<vmem>>, vector<1x1x2x8x16xf32>
    %3 = vector.shape_cast %2 : vector<1x1x2x8x16xf32> to vector<2x8x16xf32>
    %c0_7 = arith.constant 0 : index
    %c0_8 = arith.constant 0 : index
    %4 = vector.load %arg4[%c0_7, %c0_8] : memref<4x162xf32, #tpu.memory_space<vmem>>, vector<4x162xf32>
    %cst = arith.constant 0.000000e+00 : f32
    %5 = vector.broadcast %cst : f32 to vector<8x1xf32>
    %6 = vector.extract_strided_slice %3 {offsets = [0, 0, 0], sizes = [1, 8, 16], strides = [1, 1, 1]} : vector<2x8x16xf32> to vector<1x8x16xf32>
    %7 = vector.shape_cast %6 : vector<1x8x16xf32> to vector<8x16xf32>
    %8 = vector.extract_strided_slice %3 {offsets = [1, 0, 0], sizes = [1, 8, 16], strides = [1, 1, 1]} : vector<2x8x16xf32> to vector<1x8x16xf32>
    %9 = vector.shape_cast %8 : vector<1x8x16xf32> to vector<8x16xf32>
    %10 = tpu.concatenate %5, %7, %1, %9, %5 in 1 : vector<8x1xf32>, vector<8x16xf32>, vector<8x128xf32>, vector<8x16xf32>, vector<8x1xf32> -> vector<8x162xf32>
    %c0_9 = arith.constant 0 : index
    %c0_10 = arith.constant 0 : index
    %11 = vector.load %arg5[%c0_9, %c0_10] : memref<8x1xf32, #tpu.memory_space<vmem>>, vector<8x1xf32>
    %12 = vector.broadcast %11 : vector<8x1xf32> to vector<8x162xf32>
    %13 = arith.mulf %10, %12 : vector<8x162xf32>
    %c0_11 = arith.constant 0 : index
    %c0_12 = arith.constant 0 : index
    %14 = vector.load %arg6[%c0_11, %c0_12] : memref<8x1xf32, #tpu.memory_space<vmem>>, vector<8x1xf32>
    %15 = vector.broadcast %14 : vector<8x1xf32> to vector<8x162xf32>
    %16 = arith.addf %13, %15 : vector<8x162xf32>
    %cst_13 = arith.constant 0.000000e+00 : f32
    %17 = vector.broadcast %cst_13 : f32 to vector<8x162xf32>
    %18 = arith.maximumf %16, %17 : vector<8x162xf32>
    %c0_14 = arith.constant 0 : index
    %c0_15 = arith.constant 0 : index
    %19 = vector.load %arg7[%c0_14, %c0_15] : memref<4x8xf32, #tpu.memory_space<vmem>>, vector<4x8xf32>
    %20 = vector.extract_strided_slice %19 {offsets = [0, 0], sizes = [4, 1], strides = [1, 1]} : vector<4x8xf32> to vector<4x1xf32>
    %21 = vector.extract_strided_slice %18 {offsets = [0, 0], sizes = [1, 162], strides = [1, 1]} : vector<8x162xf32> to vector<1x162xf32>
    %22 = vector.broadcast %20 : vector<4x1xf32> to vector<4x162xf32>
    %23 = vector.broadcast %21 : vector<1x162xf32> to vector<4x162xf32>
    %24 = arith.mulf %22, %23 : vector<4x162xf32>
    %25 = vector.extract_strided_slice %19 {offsets = [0, 1], sizes = [4, 1], strides = [1, 1]} : vector<4x8xf32> to vector<4x1xf32>
    %26 = vector.extract_strided_slice %18 {offsets = [1, 0], sizes = [1, 162], strides = [1, 1]} : vector<8x162xf32> to vector<1x162xf32>
    %27 = vector.broadcast %25 : vector<4x1xf32> to vector<4x162xf32>
    %28 = vector.broadcast %26 : vector<1x162xf32> to vector<4x162xf32>
    %29 = arith.mulf %27, %28 : vector<4x162xf32>
    %30 = arith.addf %24, %29 : vector<4x162xf32>
    %31 = vector.extract_strided_slice %19 {offsets = [0, 2], sizes = [4, 1], strides = [1, 1]} : vector<4x8xf32> to vector<4x1xf32>
    %32 = vector.extract_strided_slice %18 {offsets = [2, 0], sizes = [1, 162], strides = [1, 1]} : vector<8x162xf32> to vector<1x162xf32>
    %33 = vector.broadcast %31 : vector<4x1xf32> to vector<4x162xf32>
    %34 = vector.broadcast %32 : vector<1x162xf32> to vector<4x162xf32>
    %35 = arith.mulf %33, %34 : vector<4x162xf32>
    %36 = arith.addf %30, %35 : vector<4x162xf32>
    %37 = vector.extract_strided_slice %19 {offsets = [0, 3], sizes = [4, 1], strides = [1, 1]} : vector<4x8xf32> to vector<4x1xf32>
    %38 = vector.extract_strided_slice %18 {offsets = [3, 0], sizes = [1, 162], strides = [1, 1]} : vector<8x162xf32> to vector<1x162xf32>
    %39 = vector.broadcast %37 : vector<4x1xf32> to vector<4x162xf32>
    %40 = vector.broadcast %38 : vector<1x162xf32> to vector<4x162xf32>
    %41 = arith.mulf %39, %40 : vector<4x162xf32>
    %42 = arith.addf %36, %41 : vector<4x162xf32>
    %43 = vector.extract_strided_slice %19 {offsets = [0, 4], sizes = [4, 1], strides = [1, 1]} : vector<4x8xf32> to vector<4x1xf32>
    %44 = vector.extract_strided_slice %18 {offsets = [4, 0], sizes = [1, 162], strides = [1, 1]} : vector<8x162xf32> to vector<1x162xf32>
    %45 = vector.broadcast %43 : vector<4x1xf32> to vector<4x162xf32>
    %46 = vector.broadcast %44 : vector<1x162xf32> to vector<4x162xf32>
    %47 = arith.mulf %45, %46 : vector<4x162xf32>
    %48 = arith.addf %42, %47 : vector<4x162xf32>
    %49 = vector.extract_strided_slice %19 {offsets = [0, 5], sizes = [4, 1], strides = [1, 1]} : vector<4x8xf32> to vector<4x1xf32>
    %50 = vector.extract_strided_slice %18 {offsets = [5, 0], sizes = [1, 162], strides = [1, 1]} : vector<8x162xf32> to vector<1x162xf32>
    %51 = vector.broadcast %49 : vector<4x1xf32> to vector<4x162xf32>
    %52 = vector.broadcast %50 : vector<1x162xf32> to vector<4x162xf32>
    %53 = arith.mulf %51, %52 : vector<4x162xf32>
    %54 = arith.addf %48, %53 : vector<4x162xf32>
    %55 = vector.extract_strided_slice %19 {offsets = [0, 6], sizes = [4, 1], strides = [1, 1]} : vector<4x8xf32> to vector<4x1xf32>
    %56 = vector.extract_strided_slice %18 {offsets = [6, 0], sizes = [1, 162], strides = [1, 1]} : vector<8x162xf32> to vector<1x162xf32>
    %57 = vector.broadcast %55 : vector<4x1xf32> to vector<4x162xf32>
    %58 = vector.broadcast %56 : vector<1x162xf32> to vector<4x162xf32>
    %59 = arith.mulf %57, %58 : vector<4x162xf32>
    %60 = arith.addf %54, %59 : vector<4x162xf32>
    %61 = vector.extract_strided_slice %19 {offsets = [0, 7], sizes = [4, 1], strides = [1, 1]} : vector<4x8xf32> to vector<4x1xf32>
    %62 = vector.extract_strided_slice %18 {offsets = [7, 0], sizes = [1, 162], strides = [1, 1]} : vector<8x162xf32> to vector<1x162xf32>
    %63 = vector.broadcast %61 : vector<4x1xf32> to vector<4x162xf32>
    %64 = vector.broadcast %62 : vector<1x162xf32> to vector<4x162xf32>
    %65 = arith.mulf %63, %64 : vector<4x162xf32>
    %66 = arith.addf %60, %65 : vector<4x162xf32>
    %c0_16 = arith.constant 0 : index
    %c0_17 = arith.constant 0 : index
    %67 = vector.load %arg8[%c0_16, %c0_17] : memref<4x1xf32, #tpu.memory_space<vmem>>, vector<4x1xf32>
    %68 = vector.broadcast %67 : vector<4x1xf32> to vector<4x162xf32>
    %69 = arith.mulf %66, %68 : vector<4x162xf32>
    %c0_18 = arith.constant 0 : index
    %c0_19 = arith.constant 0 : index
    %70 = vector.load %arg9[%c0_18, %c0_19] : memref<4x1xf32, #tpu.memory_space<vmem>>, vector<4x1xf32>
    %71 = vector.broadcast %70 : vector<4x1xf32> to vector<4x162xf32>
    %72 = arith.addf %69, %71 : vector<4x162xf32>
    %cst_20 = arith.constant 0.000000e+00 : f32
    %73 = vector.broadcast %cst_20 : f32 to vector<4x162xf32>
    %74 = arith.maximumf %72, %73 : vector<4x162xf32>
    %c0_i32 = arith.constant 0 : i32
    %75 = arith.cmpi sgt, %arg1, %c0_i32 : i32
    %cst_21 = arith.constant 1.000000e+00 : f32
    %cst_22 = arith.constant 0.000000e+00 : f32
    %76 = arith.select %75, %cst_21, %cst_22 : f32
    %c1_i32 = arith.constant 1 : i32
    %77 = arith.cmpi slt, %arg1, %c1_i32 : i32
    %cst_23 = arith.constant 1.000000e+00 : f32
    %cst_24 = arith.constant 0.000000e+00 : f32
    %78 = arith.select %77, %cst_23, %cst_24 : f32
    %cst_25 = arith.constant 1.000000e+00 : f32
    %79 = arith.subf %cst_25, %76 : f32
    %80 = vector.extract_strided_slice %4 {offsets = [2, 0], sizes = [1, 162], strides = [1, 1]} : vector<4x162xf32> to vector<1x162xf32>
    %81 = vector.broadcast %79 : f32 to vector<1x162xf32>
    %82 = arith.mulf %81, %80 : vector<1x162xf32>
    %cst_26 = arith.constant 1.000000e+00 : f32
    %83 = vector.broadcast %cst_26 : f32 to vector<1x162xf32>
    %84 = arith.subf %83, %82 : vector<1x162xf32>
    %cst_27 = arith.constant 1.000000e+00 : f32
    %85 = arith.subf %cst_27, %78 : f32
    %86 = vector.extract_strided_slice %4 {offsets = [3, 0], sizes = [1, 162], strides = [1, 1]} : vector<4x162xf32> to vector<1x162xf32>
    %87 = vector.broadcast %85 : f32 to vector<1x162xf32>
    %88 = arith.mulf %87, %86 : vector<1x162xf32>
    %89 = arith.subf %84, %88 : vector<1x162xf32>
    %90 = vector.broadcast %89 : vector<1x162xf32> to vector<4x162xf32>
    %91 = arith.mulf %74, %90 : vector<4x162xf32>
    %92 = vector.extract_strided_slice %4 {offsets = [0, 0], sizes = [1, 162], strides = [1, 1]} : vector<4x162xf32> to vector<1x162xf32>
    %93 = vector.broadcast %92 : vector<1x162xf32> to vector<4x162xf32>
    %94 = arith.mulf %91, %93 : vector<4x162xf32>
    %95 = vector.extract_strided_slice %4 {offsets = [1, 0], sizes = [1, 162], strides = [1, 1]} : vector<4x162xf32> to vector<1x162xf32>
    %96 = vector.broadcast %95 : vector<1x162xf32> to vector<4x162xf32>
    %97 = arith.mulf %91, %96 : vector<4x162xf32>
    %c0_28 = arith.constant 0 : index
    %c0_29 = arith.constant 0 : index
    %98 = vector.load %arg10[%c0_28, %c0_29] : memref<4x9xf32, #tpu.memory_space<vmem>>, vector<4x9xf32>
    %99 = vector.extract_strided_slice %91 {offsets = [0, 17], sizes = [4, 128], strides = [1, 1]} : vector<4x162xf32> to vector<4x128xf32>
    %100 = vector.extract_strided_slice %98 {offsets = [0, 4], sizes = [4, 1], strides = [1, 1]} : vector<4x9xf32> to vector<4x1xf32>
    %101 = vector.broadcast %100 : vector<4x1xf32> to vector<4x128xf32>
    %102 = arith.mulf %99, %101 : vector<4x128xf32>
    %103 = vector.extract_strided_slice %94 {offsets = [0, 0], sizes = [4, 128], strides = [1, 1]} : vector<4x162xf32> to vector<4x128xf32>
    %104 = vector.extract_strided_slice %98 {offsets = [0, 0], sizes = [4, 1], strides = [1, 1]} : vector<4x9xf32> to vector<4x1xf32>
    %105 = vector.broadcast %104 : vector<4x1xf32> to vector<4x128xf32>
    %106 = arith.mulf %103, %105 : vector<4x128xf32>
    %107 = arith.addf %102, %106 : vector<4x128xf32>
    %108 = vector.extract_strided_slice %91 {offsets = [0, 1], sizes = [4, 128], strides = [1, 1]} : vector<4x162xf32> to vector<4x128xf32>
    %109 = vector.extract_strided_slice %98 {offsets = [0, 1], sizes = [4, 1], strides = [1, 1]} : vector<4x9xf32> to vector<4x1xf32>
    %110 = vector.broadcast %109 : vector<4x1xf32> to vector<4x128xf32>
    %111 = arith.mulf %108, %110 : vector<4x128xf32>
    %112 = arith.addf %107, %111 : vector<4x128xf32>
    %113 = vector.extract_strided_slice %97 {offsets = [0, 2], sizes = [4, 128], strides = [1, 1]} : vector<4x162xf32> to vector<4x128xf32>
    %114 = vector.extract_strided_slice %98 {offsets = [0, 2], sizes = [4, 1], strides = [1, 1]} : vector<4x9xf32> to vector<4x1xf32>
    %115 = vector.broadcast %114 : vector<4x1xf32> to vector<4x128xf32>
    %116 = arith.mulf %113, %115 : vector<4x128xf32>
    %117 = arith.addf %112, %116 : vector<4x128xf32>
    %118 = vector.extract_strided_slice %94 {offsets = [0, 16], sizes = [4, 128], strides = [1, 1]} : vector<4x162xf32> to vector<4x128xf32>
    %119 = vector.extract_strided_slice %98 {offsets = [0, 3], sizes = [4, 1], strides = [1, 1]} : vector<4x9xf32> to vector<4x1xf32>
    %120 = vector.broadcast %119 : vector<4x1xf32> to vector<4x128xf32>
    %121 = arith.mulf %118, %120 : vector<4x128xf32>
    %122 = arith.addf %117, %121 : vector<4x128xf32>
    %123 = vector.extract_strided_slice %97 {offsets = [0, 18], sizes = [4, 128], strides = [1, 1]} : vector<4x162xf32> to vector<4x128xf32>
    %124 = vector.extract_strided_slice %98 {offsets = [0, 5], sizes = [4, 1], strides = [1, 1]} : vector<4x9xf32> to vector<4x1xf32>
    %125 = vector.broadcast %124 : vector<4x1xf32> to vector<4x128xf32>
    %126 = arith.mulf %123, %125 : vector<4x128xf32>
    %127 = arith.addf %122, %126 : vector<4x128xf32>
    %128 = vector.extract_strided_slice %94 {offsets = [0, 32], sizes = [4, 128], strides = [1, 1]} : vector<4x162xf32> to vector<4x128xf32>
    %129 = vector.extract_strided_slice %98 {offsets = [0, 6], sizes = [4, 1], strides = [1, 1]} : vector<4x9xf32> to vector<4x1xf32>
    %130 = vector.broadcast %129 : vector<4x1xf32> to vector<4x128xf32>
    %131 = arith.mulf %128, %130 : vector<4x128xf32>
    %132 = arith.addf %127, %131 : vector<4x128xf32>
    %133 = vector.extract_strided_slice %91 {offsets = [0, 33], sizes = [4, 128], strides = [1, 1]} : vector<4x162xf32> to vector<4x128xf32>
    %134 = vector.extract_strided_slice %98 {offsets = [0, 7], sizes = [4, 1], strides = [1, 1]} : vector<4x9xf32> to vector<4x1xf32>
    %135 = vector.broadcast %134 : vector<4x1xf32> to vector<4x128xf32>
    %136 = arith.mulf %133, %135 : vector<4x128xf32>
    %137 = arith.addf %132, %136 : vector<4x128xf32>
    %138 = vector.extract_strided_slice %97 {offsets = [0, 34], sizes = [4, 128], strides = [1, 1]} : vector<4x162xf32> to vector<4x128xf32>
    %139 = vector.extract_strided_slice %98 {offsets = [0, 8], sizes = [4, 1], strides = [1, 1]} : vector<4x9xf32> to vector<4x1xf32>
    %140 = vector.broadcast %139 : vector<4x1xf32> to vector<4x128xf32>
    %141 = arith.mulf %138, %140 : vector<4x128xf32>
    %142 = arith.addf %137, %141 : vector<4x128xf32>
    %c0_30 = arith.constant 0 : index
    %c0_31 = arith.constant 0 : index
    %143 = vector.load %arg11[%c0_30, %c0_31] : memref<4x1xf32, #tpu.memory_space<vmem>>, vector<4x1xf32>
    %144 = vector.broadcast %143 : vector<4x1xf32> to vector<4x128xf32>
    %145 = arith.mulf %142, %144 : vector<4x128xf32>
    %c0_32 = arith.constant 0 : index
    %c0_33 = arith.constant 0 : index
    %146 = vector.load %arg12[%c0_32, %c0_33] : memref<4x1xf32, #tpu.memory_space<vmem>>, vector<4x1xf32>
    %147 = vector.broadcast %146 : vector<4x1xf32> to vector<4x128xf32>
    %148 = arith.addf %145, %147 : vector<4x128xf32>
    %cst_34 = arith.constant 0.000000e+00 : f32
    %149 = vector.broadcast %cst_34 : f32 to vector<4x128xf32>
    %150 = arith.maximumf %148, %149 : vector<4x128xf32>
    %c0_35 = arith.constant 0 : index
    %c0_36 = arith.constant 0 : index
    %151 = vector.load %arg13[%c0_35, %c0_36] : memref<8x4xf32, #tpu.memory_space<vmem>>, vector<8x4xf32>
    %152 = vector.extract_strided_slice %151 {offsets = [0, 0], sizes = [8, 1], strides = [1, 1]} : vector<8x4xf32> to vector<8x1xf32>
    %153 = vector.extract_strided_slice %150 {offsets = [0, 0], sizes = [1, 128], strides = [1, 1]} : vector<4x128xf32> to vector<1x128xf32>
    %154 = vector.broadcast %152 : vector<8x1xf32> to vector<8x128xf32>
    %155 = vector.broadcast %153 : vector<1x128xf32> to vector<8x128xf32>
    %156 = arith.mulf %154, %155 : vector<8x128xf32>
    %157 = vector.extract_strided_slice %151 {offsets = [0, 1], sizes = [8, 1], strides = [1, 1]} : vector<8x4xf32> to vector<8x1xf32>
    %158 = vector.extract_strided_slice %150 {offsets = [1, 0], sizes = [1, 128], strides = [1, 1]} : vector<4x128xf32> to vector<1x128xf32>
    %159 = vector.broadcast %157 : vector<8x1xf32> to vector<8x128xf32>
    %160 = vector.broadcast %158 : vector<1x128xf32> to vector<8x128xf32>
    %161 = arith.mulf %159, %160 : vector<8x128xf32>
    %162 = arith.addf %156, %161 : vector<8x128xf32>
    %163 = vector.extract_strided_slice %151 {offsets = [0, 2], sizes = [8, 1], strides = [1, 1]} : vector<8x4xf32> to vector<8x1xf32>
    %164 = vector.extract_strided_slice %150 {offsets = [2, 0], sizes = [1, 128], strides = [1, 1]} : vector<4x128xf32> to vector<1x128xf32>
    %165 = vector.broadcast %163 : vector<8x1xf32> to vector<8x128xf32>
    %166 = vector.broadcast %164 : vector<1x128xf32> to vector<8x128xf32>
    %167 = arith.mulf %165, %166 : vector<8x128xf32>
    %168 = arith.addf %162, %167 : vector<8x128xf32>
    %169 = vector.extract_strided_slice %151 {offsets = [0, 3], sizes = [8, 1], strides = [1, 1]} : vector<8x4xf32> to vector<8x1xf32>
    %170 = vector.extract_strided_slice %150 {offsets = [3, 0], sizes = [1, 128], strides = [1, 1]} : vector<4x128xf32> to vector<1x128xf32>
    %171 = vector.broadcast %169 : vector<8x1xf32> to vector<8x128xf32>
    %172 = vector.broadcast %170 : vector<1x128xf32> to vector<8x128xf32>
    %173 = arith.mulf %171, %172 : vector<8x128xf32>
    %174 = arith.addf %168, %173 : vector<8x128xf32>
    %c0_37 = arith.constant 0 : index
    %c0_38 = arith.constant 0 : index
    %175 = vector.load %arg14[%c0_37, %c0_38] : memref<8x1xf32, #tpu.memory_space<vmem>>, vector<8x1xf32>
    %176 = vector.broadcast %175 : vector<8x1xf32> to vector<8x128xf32>
    %177 = arith.addf %174, %176 : vector<8x128xf32>
    %178 = arith.addf %177, %1 : vector<8x128xf32>
    %c0_39 = arith.constant 0 : index
    %c0_40 = arith.constant 0 : index
    %c0_41 = arith.constant 0 : index
    %179 = vector.load %arg15[%c0_39, %c0_40, %c0_41] : memref<1x8x128xf32, #tpu.memory_space<vmem>>, vector<1x8x128xf32>
    %180 = vector.shape_cast %179 : vector<1x8x128xf32> to vector<8x128xf32>
    %181 = vector.shape_cast %178 : vector<8x128xf32> to vector<1x8x128xf32>
    tpu.vector_store %arg15[%c0_39, %c0_40, %c0_41], %181 {strides = array<i32>} : memref<1x8x128xf32, #tpu.memory_space<vmem>>, vector<1x8x128xf32>,
    return
  }
  func.func @transform_0(%arg0: i32, %arg1: i32) -> (i32, i32, i32) {
    %c0_i32 = arith.constant 0 : i32
    %c0_i32_0 = arith.constant 0 : i32
    return %arg0, %c0_i32, %arg1 : i32, i32, i32
  }
  func.func @transform_1(%arg0: i32, %arg1: i32) -> (i32, i32, i32, i32, i32) {
    %c0_i32 = arith.constant 0 : i32
    %c0_i32_0 = arith.constant 0 : i32
    %c0_i32_1 = arith.constant 0 : i32
    %c0_i32_2 = arith.constant 0 : i32
    return %arg0, %arg1, %c0_i32, %c0_i32_0, %c0_i32_1 : i32, i32, i32, i32, i32
  }
  func.func @transform_2(%arg0: i32, %arg1: i32) -> (i32, i32) {
    %c0_i32 = arith.constant 0 : i32
    %c0_i32_0 = arith.constant 0 : i32
    %c0_i32_1 = arith.constant 0 : i32
    return %c0_i32, %c0_i32_0 : i32, i32
  }
  func.func @transform_3(%arg0: i32, %arg1: i32) -> (i32, i32) {
    %c0_i32 = arith.constant 0 : i32
    %c0_i32_0 = arith.constant 0 : i32
    %c0_i32_1 = arith.constant 0 : i32
    return %c0_i32, %c0_i32_0 : i32, i32
  }
  func.func @transform_4(%arg0: i32, %arg1: i32) -> (i32, i32) {
    %c0_i32 = arith.constant 0 : i32
    %c0_i32_0 = arith.constant 0 : i32
    %c0_i32_1 = arith.constant 0 : i32
    return %c0_i32, %c0_i32_0 : i32, i32
  }
  func.func @transform_5(%arg0: i32, %arg1: i32) -> (i32, i32) {
    %c0_i32 = arith.constant 0 : i32
    %c0_i32_0 = arith.constant 0 : i32
    %c0_i32_1 = arith.constant 0 : i32
    return %c0_i32, %c0_i32_0 : i32, i32
  }
  func.func @transform_6(%arg0: i32, %arg1: i32) -> (i32, i32) {
    %c0_i32 = arith.constant 0 : i32
    %c0_i32_0 = arith.constant 0 : i32
    %c0_i32_1 = arith.constant 0 : i32
    return %c0_i32, %c0_i32_0 : i32, i32
  }
  func.func @transform_7(%arg0: i32, %arg1: i32) -> (i32, i32) {
    %c0_i32 = arith.constant 0 : i32
    %c0_i32_0 = arith.constant 0 : i32
    %c0_i32_1 = arith.constant 0 : i32
    return %c0_i32, %c0_i32_0 : i32, i32
  }
  func.func @transform_8(%arg0: i32, %arg1: i32) -> (i32, i32) {
    %c0_i32 = arith.constant 0 : i32
    %c0_i32_0 = arith.constant 0 : i32
    %c0_i32_1 = arith.constant 0 : i32
    return %c0_i32, %c0_i32_0 : i32, i32
  }
  func.func @transform_9(%arg0: i32, %arg1: i32) -> (i32, i32) {
    %c0_i32 = arith.constant 0 : i32
    %c0_i32_0 = arith.constant 0 : i32
    %c0_i32_1 = arith.constant 0 : i32
    return %c0_i32, %c0_i32_0 : i32, i32
  }
  func.func @transform_10(%arg0: i32, %arg1: i32) -> (i32, i32) {
    %c0_i32 = arith.constant 0 : i32
    %c0_i32_0 = arith.constant 0 : i32
    %c0_i32_1 = arith.constant 0 : i32
    return %c0_i32, %c0_i32_0 : i32, i32
  }
  func.func @transform_11(%arg0: i32, %arg1: i32) -> (i32, i32) {
    %c0_i32 = arith.constant 0 : i32
    %c0_i32_0 = arith.constant 0 : i32
    %c0_i32_1 = arith.constant 0 : i32
    return %c0_i32, %c0_i32_0 : i32, i32
  }
  func.func @transform_12(%arg0: i32, %arg1: i32) -> (i32, i32) {
    %c0_i32 = arith.constant 0 : i32
    %c0_i32_0 = arith.constant 0 : i32
    %c0_i32_1 = arith.constant 0 : i32
    return %c0_i32, %c0_i32_0 : i32, i32
  }
  func.func @transform_13(%arg0: i32, %arg1: i32) -> (i32, i32, i32) {
    %c0_i32 = arith.constant 0 : i32
    %c0_i32_0 = arith.constant 0 : i32
    return %arg0, %c0_i32, %arg1 : i32, i32, i32
  }
}

</mosaic_0001>

<llo_original>
// kernel: tpu_custom_call.1
$region0: #{tpu_custom_call.1}
  #allocation0 [shape = 'u32[]', space=smem, size = 0x4, offset = 0x4, fixed_abs, tag = 'smem constant byte address 0x4 - core index']
  #allocation1 [shape = 'u32[144,128]{1,0:T(1,128)}', space=vmem, size = 0x12000, scoped, tag = 'internal scratch']
  %s0 = inlined_call_operand.vmem [shape: f32[2,8,256], index: 0, kind: input, shape index: {}]
  %s1 = inlined_call_operand.hbm [shape: f32[2,2,2,8,16], index: 1, kind: input, shape index: {}]
  %s2 = inlined_call_operand.vmem [shape: f32[4,162], index: 2, kind: input, shape index: {}]
  %s3 = inlined_call_operand.vmem [shape: f32[8,1], index: 3, kind: input, shape index: {}]
  %s4 = inlined_call_operand.vmem [shape: f32[8,1], index: 4, kind: input, shape index: {}]
  %s5 = inlined_call_operand.vmem [shape: f32[4,8], index: 5, kind: input, shape index: {}]
  %s6 = inlined_call_operand.vmem [shape: f32[4,1], index: 6, kind: input, shape index: {}]
  %s7 = inlined_call_operand.vmem [shape: f32[4,1], index: 7, kind: input, shape index: {}]
  %s8 = inlined_call_operand.vmem [shape: f32[4,9], index: 8, kind: input, shape index: {}]
  %s9 = inlined_call_operand.vmem [shape: f32[4,1], index: 9, kind: input, shape index: {}]
  %s10 = inlined_call_operand.vmem [shape: f32[4,1], index: 10, kind: input, shape index: {}]
  %s11 = inlined_call_operand.vmem [shape: f32[8,4], index: 11, kind: input, shape index: {}]
  %s12 = inlined_call_operand.vmem [shape: f32[8,1], index: 12, kind: input, shape index: {}]
  %s13 = inlined_call_operand.hbm [shape: f32[2,8,256], index: 13, kind: output, shape index: {}]
  %s14 = sld [smem:[#allocation0]]
  $region89: #{tpu_custom_call.1} parent=0
    _
  %s16 = ssub.s32 1, %s14
  %s17 = scalar_select 0, %s16, %s14
  $region1: #{tpu_custom_call.1} parent=0
    #allocation2 [shape = 'u8[16384]{0}', space=vmem, size = 0x4000, scoped, tag = 'input window, operand 1']
    #allocation3 [shape = 's32[2]{0}', space=sflag, size = 0x8, scoped, tag = 'scoped memory for tpu_custom_call.1']
    #allocation4 [shape = 's32[2]{0}', space=sflag, size = 0x8, scoped, tag = 'scoped memory for tpu_custom_call.1']
    #allocation5 [shape = 'u8[8192]{0}', space=vmem, size = 0x2000, scoped, tag = 'output window, operand 0']
    %18 = vsyncpa [#allocation3], 0
    %s19 = scalar_lea.sflag [#allocation3], 1
    %20 = vsyncpa %s19, 0
    %21 = vsyncpa [#allocation4], 0
    %s22 = scalar_lea.sflag [#allocation4], 1
    %23 = vsyncpa %s22, 0
    loop: start=0, step=1, limit=6
    $region2: #{tpu_custom_call.1} parent=1 // loop_pre_header
      _
    $region3: #{tpu_custom_call.1} parent=1 // loop_header
      %s25 = sphi 0, %s29
      %p26 = scmp.ge.s32.totalorder %s25, 6
      %s32 = sphi 0, %s44
      %s33 = sphi 0, %s40
      %s34 = sphi 0, %s32
      %s35 = sphi 0, %s33
      %s36 = sphi 0, %s34
      %s37 = sphi 0, %s35
      %s49 = sphi 0, %s51
      %s52 = sphi 0, %s49
      %s53 = sphi 0, %s52
      %s69 = sphi 0, %s53
      %s77 = sphi 0, %s79
      %s80 = sphi 0, %s77
      %s81 = sphi 0, %s80
      %s97 = sphi 0, %s81
      %s101 = sphi 0, %s101
      %s103 = sphi 0, %s101
      %s104 = sphi 0, %s103
      %s118 = sphi 0, %s104
      %s122 = sphi 0, %s122
      %s124 = sphi 0, %s122
      %s125 = sphi 0, %s124
      %s139 = sphi 0, %s125
      %s143 = sphi 0, %s143
      %s145 = sphi 0, %s143
      %s146 = sphi 0, %s145
      %s160 = sphi 0, %s146
      %s164 = sphi 0, %s164
      %s166 = sphi 0, %s164
      %s167 = sphi 0, %s166
      %s181 = sphi 0, %s167
      %s185 = sphi 0, %s185
      %s187 = sphi 0, %s185
      %s188 = sphi 0, %s187
      %s202 = sphi 0, %s188
      %s206 = sphi 0, %s206
      %s208 = sphi 0, %s206
      %s209 = sphi 0, %s208
      %s223 = sphi 0, %s209
      %s227 = sphi 0, %s227
      %s229 = sphi 0, %s227
      %s230 = sphi 0, %s229
      %s244 = sphi 0, %s230
      %s248 = sphi 0, %s248
      %s250 = sphi 0, %s248
      %s251 = sphi 0, %s250
      %s265 = sphi 0, %s251
      %s269 = sphi 0, %s269
      %s271 = sphi 0, %s269
      %s272 = sphi 0, %s271
      %s286 = sphi 0, %s272
      %s290 = sphi 0, %s290
      %s292 = sphi 0, %s290
      %s293 = sphi 0, %s292
      %s307 = sphi 0, %s293
      %s311 = sphi 0, %s311
      %s313 = sphi 0, %s311
      %s314 = sphi 0, %s313
      %s328 = sphi 0, %s314
      %s336 = sphi 0, %s338
      %s339 = sphi 0, %s336
      %s340 = sphi 0, %s339
      %s356 = sphi 0, %s340
    $region4: #{tpu_custom_call.1} parent=1 // loop_header_branch
      %28 = sbr.rel (%p26) target = $region8
    $region5: #{tpu_custom_call.1} parent=1 // loop_body
      %s30 = ssub.s32 %s25, 1
      %s31 = ssub.s32 %s25, 2
      %s38 = sadd.s32 1, %s33
      %p39 = scmp.ge.s32.totalorder %s38, 2
      %s40 = scalar_select %p39, 0, %s38
      %s41 = sadd.s32 1, %s32
      %s42 = scalar_select %p39, %s41, %s32
      %p43 = scmp.ge.s32.totalorder %s42, 2
      %s44 = scalar_select %p43, 0, %s42
      %s45 = ssub.s32 %s32, %s44
      %s46 = ssub.s32 %s33, %s40
      %s47 = sor.u32 %s45, %s46
      %p48 = scmp.eq.s32.totalorder %s47, 0
      %s50 = sadd.s32 %s49, 1
      %s51 = scalar_select %p48, %s49, %s50
      %p54 = pneg %p48
      %p55 = scmp.eq.s32.totalorder %s25, 3
      %p56 = por %p54, %p55
      %p57 = scmp.ne.s32.totalorder %s49, %s52
      %p58 = scmp.eq.s32.totalorder %s25, 0
      %p59 = por %p57, %p58
      %p60 = scmp.ne.s32.totalorder %s49, %s52
      %p61 = scmp.eq.s32.totalorder %s30, 3
      %p62 = por %p60, %p61
      %p63 = scmp.ne.s32.totalorder %s52, %s53
      %p64 = scmp.eq.s32.totalorder %s30, 0
      %p65 = por %p63, %p64
      %p66 = scmp.ne.s32.totalorder %s52, %s53
      %p67 = scmp.eq.s32.totalorder %s31, 3
      %p68 = por %p66, %p67
      %p70 = scmp.ne.s32.totalorder %s53, %s69
      %p71 = scmp.eq.s32.totalorder %s31, 0
      %p72 = por %p70, %p71
      %s73 = ssub.s32 %s32, %s44
      %s74 = ssub.s32 %s33, %s40
      %s75 = sor.u32 %s73, %s74
      %p76 = scmp.eq.s32.totalorder %s75, 0
      %s78 = sadd.s32 %s77, 1
      %s79 = scalar_select %p76, %s77, %s78
      %p82 = pneg %p76
      %p83 = scmp.eq.s32.totalorder %s25, 3
      %p84 = por %p82, %p83
      %p85 = scmp.ne.s32.totalorder %s77, %s80
      %p86 = scmp.eq.s32.totalorder %s25, 0
      %p87 = por %p85, %p86
      %p88 = scmp.ne.s32.totalorder %s77, %s80
      %p89 = scmp.eq.s32.totalorder %s30, 3
      %p90 = por %p88, %p89
      %p91 = scmp.ne.s32.totalorder %s80, %s81
      %p92 = scmp.eq.s32.totalorder %s30, 0
      %p93 = por %p91, %p92
      %p94 = scmp.ne.s32.totalorder %s80, %s81
      %p95 = scmp.eq.s32.totalorder %s31, 3
      %p96 = por %p94, %p95
      %p98 = scmp.ne.s32.totalorder %s81, %s97
      %p99 = scmp.eq.s32.totalorder %s31, 0
      %p100 = por %p98, %p99
      %s102 = sadd.s32 %s101, 1
      %p105 = scmp.eq.s32.totalorder %s25, 3
      %p106 = scmp.ne.s32.totalorder %s101, %s103
      %p107 = scmp.eq.s32.totalorder %s25, 0
      %p108 = por %p106, %p107
      %p109 = scmp.ne.s32.totalorder %s101, %s103
      %p110 = scmp.eq.s32.totalorder %s30, 3
      %p111 = por %p109, %p110
      %p112 = scmp.ne.s32.totalorder %s103, %s104
      %p113 = scmp.eq.s32.totalorder %s30, 0
      %p114 = por %p112, %p113
      %p115 = scmp.ne.s32.totalorder %s103, %s104
      %p116 = scmp.eq.s32.totalorder %s31, 3
      %p117 = por %p115, %p116
      %p119 = scmp.ne.s32.totalorder %s104, %s118
      %p120 = scmp.eq.s32.totalorder %s31, 0
      %p121 = por %p119, %p120
      %s123 = sadd.s32 %s122, 1
      %p126 = scmp.eq.s32.totalorder %s25, 3
      %p127 = scmp.ne.s32.totalorder %s122, %s124
      %p128 = scmp.eq.s32.totalorder %s25, 0
      %p129 = por %p127, %p128
      %p130 = scmp.ne.s32.totalorder %s122, %s124
      %p131 = scmp.eq.s32.totalorder %s30, 3
      %p132 = por %p130, %p131
      %p133 = scmp.ne.s32.totalorder %s124, %s125
      %p134 = scmp.eq.s32.totalorder %s30, 0
      %p135 = por %p133, %p134
      %p136 = scmp.ne.s32.totalorder %s124, %s125
      %p137 = scmp.eq.s32.totalorder %s31, 3
      %p138 = por %p136, %p137
      %p140 = scmp.ne.s32.totalorder %s125, %s139
      %p141 = scmp.eq.s32.totalorder %s31, 0
      %p142 = por %p140, %p141
      %s144 = sadd.s32 %s143, 1
      %p147 = scmp.eq.s32.totalorder %s25, 3
      %p148 = scmp.ne.s32.totalorder %s143, %s145
      %p149 = scmp.eq.s32.totalorder %s25, 0
      %p150 = por %p148, %p149
      %p151 = scmp.ne.s32.totalorder %s143, %s145
      %p152 = scmp.eq.s32.totalorder %s30, 3
      %p153 = por %p151, %p152
      %p154 = scmp.ne.s32.totalorder %s145, %s146
      %p155 = scmp.eq.s32.totalorder %s30, 0
      %p156 = por %p154, %p155
      %p157 = scmp.ne.s32.totalorder %s145, %s146
      %p158 = scmp.eq.s32.totalorder %s31, 3
      %p159 = por %p157, %p158
      %p161 = scmp.ne.s32.totalorder %s146, %s160
      %p162 = scmp.eq.s32.totalorder %s31, 0
      %p163 = por %p161, %p162
      %s165 = sadd.s32 %s164, 1
      %p168 = scmp.eq.s32.totalorder %s25, 3
      %p169 = scmp.ne.s32.totalorder %s164, %s166
      %p170 = scmp.eq.s32.totalorder %s25, 0
      %p171 = por %p169, %p170
      %p172 = scmp.ne.s32.totalorder %s164, %s166
      %p173 = scmp.eq.s32.totalorder %s30, 3
      %p174 = por %p172, %p173
      %p175 = scmp.ne.s32.totalorder %s166, %s167
      %p176 = scmp.eq.s32.totalorder %s30, 0
      %p177 = por %p175, %p176
      %p178 = scmp.ne.s32.totalorder %s166, %s167
      %p179 = scmp.eq.s32.totalorder %s31, 3
      %p180 = por %p178, %p179
      %p182 = scmp.ne.s32.totalorder %s167, %s181
      %p183 = scmp.eq.s32.totalorder %s31, 0
      %p184 = por %p182, %p183
      %s186 = sadd.s32 %s185, 1
      %p189 = scmp.eq.s32.totalorder %s25, 3
      %p190 = scmp.ne.s32.totalorder %s185, %s187
      %p191 = scmp.eq.s32.totalorder %s25, 0
      %p192 = por %p190, %p191
      %p193 = scmp.ne.s32.totalorder %s185, %s187
      %p194 = scmp.eq.s32.totalorder %s30, 3
      %p195 = por %p193, %p194
      %p196 = scmp.ne.s32.totalorder %s187, %s188
      %p197 = scmp.eq.s32.totalorder %s30, 0
      %p198 = por %p196, %p197
      %p199 = scmp.ne.s32.totalorder %s187, %s188
      %p200 = scmp.eq.s32.totalorder %s31, 3
      %p201 = por %p199, %p200
      %p203 = scmp.ne.s32.totalorder %s188, %s202
      %p204 = scmp.eq.s32.totalorder %s31, 0
      %p205 = por %p203, %p204
      %s207 = sadd.s32 %s206, 1
      %p210 = scmp.eq.s32.totalorder %s25, 3
      %p211 = scmp.ne.s32.totalorder %s206, %s208
      %p212 = scmp.eq.s32.totalorder %s25, 0
      %p213 = por %p211, %p212
      %p214 = scmp.ne.s32.totalorder %s206, %s208
      %p215 = scmp.eq.s32.totalorder %s30, 3
      %p216 = por %p214, %p215
      %p217 = scmp.ne.s32.totalorder %s208, %s209
      %p218 = scmp.eq.s32.totalorder %s30, 0
      %p219 = por %p217, %p218
      %p220 = scmp.ne.s32.totalorder %s208, %s209
      %p221 = scmp.eq.s32.totalorder %s31, 3
      %p222 = por %p220, %p221
      %p224 = scmp.ne.s32.totalorder %s209, %s223
      %p225 = scmp.eq.s32.totalorder %s31, 0
      %p226 = por %p224, %p225
      %s228 = sadd.s32 %s227, 1
      %p231 = scmp.eq.s32.totalorder %s25, 3
      %p232 = scmp.ne.s32.totalorder %s227, %s229
      %p233 = scmp.eq.s32.totalorder %s25, 0
      %p234 = por %p232, %p233
      %p235 = scmp.ne.s32.totalorder %s227, %s229
      %p236 = scmp.eq.s32.totalorder %s30, 3
      %p237 = por %p235, %p236
      %p238 = scmp.ne.s32.totalorder %s229, %s230
      %p239 = scmp.eq.s32.totalorder %s30, 0
      %p240 = por %p238, %p239
      %p241 = scmp.ne.s32.totalorder %s229, %s230
      %p242 = scmp.eq.s32.totalorder %s31, 3
      %p243 = por %p241, %p242
      %p245 = scmp.ne.s32.totalorder %s230, %s244
      %p246 = scmp.eq.s32.totalorder %s31, 0
      %p247 = por %p245, %p246
      %s249 = sadd.s32 %s248, 1
      %p252 = scmp.eq.s32.totalorder %s25, 3
      %p253 = scmp.ne.s32.totalorder %s248, %s250
      %p254 = scmp.eq.s32.totalorder %s25, 0
      %p255 = por %p253, %p254
      %p256 = scmp.ne.s32.totalorder %s248, %s250
      %p257 = scmp.eq.s32.totalorder %s30, 3
      %p258 = por %p256, %p257
      %p259 = scmp.ne.s32.totalorder %s250, %s251
      %p260 = scmp.eq.s32.totalorder %s30, 0
      %p261 = por %p259, %p260
      %p262 = scmp.ne.s32.totalorder %s250, %s251
      %p263 = scmp.eq.s32.totalorder %s31, 3
      %p264 = por %p262, %p263
      %p266 = scmp.ne.s32.totalorder %s251, %s265
      %p267 = scmp.eq.s32.totalorder %s31, 0
      %p268 = por %p266, %p267
      %s270 = sadd.s32 %s269, 1
      %p273 = scmp.eq.s32.totalorder %s25, 3
      %p274 = scmp.ne.s32.totalorder %s269, %s271
      %p275 = scmp.eq.s32.totalorder %s25, 0
      %p276 = por %p274, %p275
      %p277 = scmp.ne.s32.totalorder %s269, %s271
      %p278 = scmp.eq.s32.totalorder %s30, 3
      %p279 = por %p277, %p278
      %p280 = scmp.ne.s32.totalorder %s271, %s272
      %p281 = scmp.eq.s32.totalorder %s30, 0
      %p282 = por %p280, %p281
      %p283 = scmp.ne.s32.totalorder %s271, %s272
      %p284 = scmp.eq.s32.totalorder %s31, 3
      %p285 = por %p283, %p284
      %p287 = scmp.ne.s32.totalorder %s272, %s286
      %p288 = scmp.eq.s32.totalorder %s31, 0
      %p289 = por %p287, %p288
      %s291 = sadd.s32 %s290, 1
      %p294 = scmp.eq.s32.totalorder %s25, 3
      %p295 = scmp.ne.s32.totalorder %s290, %s292
      %p296 = scmp.eq.s32.totalorder %s25, 0
      %p297 = por %p295, %p296
      %p298 = scmp.ne.s32.totalorder %s290, %s292
      %p299 = scmp.eq.s32.totalorder %s30, 3
      %p300 = por %p298, %p299
      %p301 = scmp.ne.s32.totalorder %s292, %s293
      %p302 = scmp.eq.s32.totalorder %s30, 0
      %p303 = por %p301, %p302
      %p304 = scmp.ne.s32.totalorder %s292, %s293
      %p305 = scmp.eq.s32.totalorder %s31, 3
      %p306 = por %p304, %p305
      %p308 = scmp.ne.s32.totalorder %s293, %s307
      %p309 = scmp.eq.s32.totalorder %s31, 0
      %p310 = por %p308, %p309
      %s312 = sadd.s32 %s311, 1
      %p315 = scmp.eq.s32.totalorder %s25, 3
      %p316 = scmp.ne.s32.totalorder %s311, %s313
      %p317 = scmp.eq.s32.totalorder %s25, 0
      %p318 = por %p316, %p317
      %p319 = scmp.ne.s32.totalorder %s311, %s313
      %p320 = scmp.eq.s32.totalorder %s30, 3
      %p321 = por %p319, %p320
      %p322 = scmp.ne.s32.totalorder %s313, %s314
      %p323 = scmp.eq.s32.totalorder %s30, 0
      %p324 = por %p322, %p323
      %p325 = scmp.ne.s32.totalorder %s313, %s314
      %p326 = scmp.eq.s32.totalorder %s31, 3
      %p327 = por %p325, %p326
      %p329 = scmp.ne.s32.totalorder %s314, %s328
      %p330 = scmp.eq.s32.totalorder %s31, 0
      %p331 = por %p329, %p330
      %s332 = ssub.s32 %s32, %s44
      %s333 = ssub.s32 %s33, %s40
      %s334 = sor.u32 %s332, %s333
      %p335 = scmp.eq.s32.totalorder %s334, 0
      %s337 = sadd.s32 %s336, 1
      %s338 = scalar_select %p335, %s336, %s337
      %p341 = pneg %p335
      %p342 = scmp.eq.s32.totalorder %s25, 3
      %p343 = por %p341, %p342
      %p344 = scmp.ne.s32.totalorder %s336, %s339
      %p345 = scmp.eq.s32.totalorder %s25, 0
      %p346 = por %p344, %p345
      %p347 = scmp.ne.s32.totalorder %s336, %s339
      %p348 = scmp.eq.s32.totalorder %s30, 3
      %p349 = por %p347, %p348
      %p350 = scmp.ne.s32.totalorder %s339, %s340
      %p351 = scmp.eq.s32.totalorder %s30, 0
      %p352 = por %p350, %p351
      %p353 = scmp.ne.s32.totalorder %s339, %s340
      %p354 = scmp.eq.s32.totalorder %s31, 3
      %p355 = por %p353, %p354
      %p357 = scmp.ne.s32.totalorder %s340, %s356
      %p358 = scmp.eq.s32.totalorder %s31, 0
      %p359 = por %p357, %p358
      %p360 = scmp.le.s32.totalorder 1, %s25
      %p361 = scmp.lt.s32.totalorder %s25, 5
      %p362 = pnand %p360, %p361
      %p363 = pneg %p362
      // Predicated region
      $region9: #{tpu_custom_call.1} parent=5 // pred_check
        _
      $region10: #{tpu_custom_call.1} parent=5 // pred_check_branch
        %365 = sbr.rel (%p362) target = $region12
      $region11: #{tpu_custom_call.1} parent=5 // pred_region
        %s366 = ssub.s32 %s25, 1
        // Predicated region
        $region13: #{tpu_custom_call.1} parent=11 // pred_check
          %p367 = pneg %p114
        $region14: #{tpu_custom_call.1} parent=11 // pred_check_branch
          %369 = sbr.rel (%p367) target = $region16
        $region15: #{tpu_custom_call.1} parent=11 // pred_region
          _
        $region16: #{tpu_custom_call.1} parent=11 // pred_fallthru
          _
        // Predicated region
        $region17: #{tpu_custom_call.1} parent=11 // pred_check
          %p370 = pneg %p135
        $region18: #{tpu_custom_call.1} parent=11 // pred_check_branch
          %372 = sbr.rel (%p370) target = $region20
        $region19: #{tpu_custom_call.1} parent=11 // pred_region
          _
        $region20: #{tpu_custom_call.1} parent=11 // pred_fallthru
          _
        // Predicated region
        $region21: #{tpu_custom_call.1} parent=11 // pred_check
          %p373 = pneg %p156
        $region22: #{tpu_custom_call.1} parent=11 // pred_check_branch
          %375 = sbr.rel (%p373) target = $region24
        $region23: #{tpu_custom_call.1} parent=11 // pred_region
          _
        $region24: #{tpu_custom_call.1} parent=11 // pred_fallthru
          _
        // Predicated region
        $region25: #{tpu_custom_call.1} parent=11 // pred_check
          %p376 = pneg %p177
        $region26: #{tpu_custom_call.1} parent=11 // pred_check_branch
          %378 = sbr.rel (%p376) target = $region28
        $region27: #{tpu_custom_call.1} parent=11 // pred_region
          _
        $region28: #{tpu_custom_call.1} parent=11 // pred_fallthru
          _
        // Predicated region
        $region29: #{tpu_custom_call.1} parent=11 // pred_check
          %p379 = pneg %p198
        $region30: #{tpu_custom_call.1} parent=11 // pred_check_branch
          %381 = sbr.rel (%p379) target = $region32
        $region31: #{tpu_custom_call.1} parent=11 // pred_region
          _
        $region32: #{tpu_custom_call.1} parent=11 // pred_fallthru
          _
        // Predicated region
        $region33: #{tpu_custom_call.1} parent=11 // pred_check
          %p382 = pneg %p219
        $region34: #{tpu_custom_call.1} parent=11 // pred_check_branch
          %384 = sbr.rel (%p382) target = $region36
        $region35: #{tpu_custom_call.1} parent=11 // pred_region
          _
        $region36: #{tpu_custom_call.1} parent=11 // pred_fallthru
          _
        // Predicated region
        $region37: #{tpu_custom_call.1} parent=11 // pred_check
          %p385 = pneg %p240
        $region38: #{tpu_custom_call.1} parent=11 // pred_check_branch
          %387 = sbr.rel (%p385) target = $region40
        $region39: #{tpu_custom_call.1} parent=11 // pred_region
          _
        $region40: #{tpu_custom_call.1} parent=11 // pred_fallthru
          _
        // Predicated region
        $region41: #{tpu_custom_call.1} parent=11 // pred_check
          %p388 = pneg %p261
        $region42: #{tpu_custom_call.1} parent=11 // pred_check_branch
          %390 = sbr.rel (%p388) target = $region44
        $region43: #{tpu_custom_call.1} parent=11 // pred_region
          _
        $region44: #{tpu_custom_call.1} parent=11 // pred_fallthru
          _
        // Predicated region
        $region45: #{tpu_custom_call.1} parent=11 // pred_check
          %p391 = pneg %p282
        $region46: #{tpu_custom_call.1} parent=11 // pred_check_branch
          %393 = sbr.rel (%p391) target = $region48
        $region47: #{tpu_custom_call.1} parent=11 // pred_region
          _
        $region48: #{tpu_custom_call.1} parent=11 // pred_fallthru
          _
        // Predicated region
        $region49: #{tpu_custom_call.1} parent=11 // pred_check
          %p394 = pneg %p303
        $region50: #{tpu_custom_call.1} parent=11 // pred_check_branch
          %396 = sbr.rel (%p394) target = $region52
        $region51: #{tpu_custom_call.1} parent=11 // pred_region
          _
        $region52: #{tpu_custom_call.1} parent=11 // pred_fallthru
          _
        // Predicated region
        $region53: #{tpu_custom_call.1} parent=11 // pred_check
          %p397 = pneg %p324
        $region54: #{tpu_custom_call.1} parent=11 // pred_check_branch
          %399 = sbr.rel (%p397) target = $region56
        $region55: #{tpu_custom_call.1} parent=11 // pred_region
          _
        $region56: #{tpu_custom_call.1} parent=11 // pred_fallthru
          _
      $region12: #{tpu_custom_call.1} parent=5 // pred_fallthru
        _
      %p400 = scmp.lt.s32.totalorder %s25, 4
      // Predicated region
      $region57: #{tpu_custom_call.1} parent=5 // pred_check
        %p401 = pneg %p400
      $region58: #{tpu_custom_call.1} parent=5 // pred_check_branch
        %403 = sbr.rel (%p401) target = $region60
      $region59: #{tpu_custom_call.1} parent=5 // pred_region
        // Predicated region
        $region61: #{tpu_custom_call.1} parent=59 // pred_check
          %p404 = pneg %p59
        $region62: #{tpu_custom_call.1} parent=59 // pred_check_branch
          %406 = sbr.rel (%p404) target = $region64
        $region63: #{tpu_custom_call.1} parent=59 // pred_region
          %p407 = scmp.lt.s32.totalorder %s32, 1
          %s408 = scalar_select %p407, %s32, 1
          %p409 = scmp.lt.s32.totalorder %s33, 1
          %s410 = scalar_select %p409, %s33, 1
          %s411 = smul.addr %s408, 2
          %s412 = sadd.s32 %s410, %s411
          %s413 = smul.addr %s412, 8
          %s414 = scalar_lea.vmem %s0, %s413
        $region64: #{tpu_custom_call.1} parent=59 // pred_fallthru
          _
        // Predicated region
        $region65: #{tpu_custom_call.1} parent=59 // pred_check
          %p415 = pneg %p87
        $region66: #{tpu_custom_call.1} parent=59 // pred_check_branch
          %417 = sbr.rel (%p415) target = $region68
        $region67: #{tpu_custom_call.1} parent=59 // pred_region
          %s418 = sand.u32 %s77, 1
          %s419 = scalar_lea.sflag [#allocation3], %s418
          %s420 = sand.u32 %s77, 1
          %s421 = smul.addr %s420, 16
          %s422 = scalar_lea.vmem [#allocation2], %s421
          %s424 = ssub.s32 256, 256
          %425 = vsyncadd %s419, %s424
          %s426 = smul.addr %s33, 2
          %s427 = smul.addr %s32, 4
          %s428 = sadd.s32 %s426, %s427
          %s429 = smul.addr %s428, 128
          %s430 = scalar_lea.hbm %s1, %s429
          %s431 = sshll.u32 %s422, 4
          %s432 = int_to_ptr.vmem [resolvable:$true] %s431
          %437 = dma.hbm_to_vmem [thread:$0]  %s430, 256, %s432, %s419, 128, 128, 8
        $region68: #{tpu_custom_call.1} parent=59 // pred_fallthru
          _
      $region60: #{tpu_custom_call.1} parent=5 // pred_fallthru
        _
      %p438 = scmp.le.s32.totalorder 1, %s25
      %p439 = scmp.lt.s32.totalorder %s25, 5
      %p440 = pnand %p438, %p439
      %p441 = pneg %p440
      // Predicated region
      $region69: #{tpu_custom_call.1} parent=5 // pred_check
        _
      $region70: #{tpu_custom_call.1} parent=5 // pred_check_branch
        %443 = sbr.rel (%p440) target = $region72
      $region71: #{tpu_custom_call.1} parent=5 // pred_region
        %s444 = ssub.s32 %s25, 1
        %s445 = sand.u32 %s80, 1
        %s446 = scalar_lea.sflag [#allocation3], %s445
        %s447 = sand.u32 %s80, 1
        %s448 = smul.addr %s447, 16
        %s449 = scalar_lea.vmem [#allocation2], %s448
        // Predicated region
        $region73: #{tpu_custom_call.1} parent=71 // pred_check
          %p450 = pneg %p93
        $region74: #{tpu_custom_call.1} parent=71 // pred_check_branch
          %452 = sbr.rel (%p450) target = $region76
        $region75: #{tpu_custom_call.1} parent=71 // pred_region
          %453 = dma.done %s446, 256
        $region76: #{tpu_custom_call.1} parent=71 // pred_fallthru
          _
        %p454 = scmp.lt.s32.totalorder %s34, 1
        %s455 = scalar_select %p454, %s34, 1
        %p456 = scmp.lt.s32.totalorder %s35, 1
        %s457 = scalar_select %p456, %s35, 1
        %s458 = smul.addr %s455, 2
        %s459 = sadd.s32 %s457, %s458
        %s460 = smul.addr %s459, 8
        %s461 = scalar_lea.vmem %s0, %s460
        %p462 = pneg %p65
        %p463 = pneg %p62
        %s464 = sand.u32 %s80, 1
        %s465 = scalar_lea.sflag [#allocation3], %s464
        %s466 = sand.u32 %s80, 1
        %s467 = smul.addr %s466, 16
        %s468 = scalar_lea.vmem [#allocation2], %s467
        %p469 = pneg %p93
        %p470 = pneg %p90
        %p471 = pneg %p114
        %p472 = pneg %p111
        %p473 = pneg %p135
        %p474 = pneg %p132
        %p475 = pneg %p156
        %p476 = pneg %p153
        %p477 = pneg %p177
        %p478 = pneg %p174
        %p479 = pneg %p198
        %p480 = pneg %p195
        %p481 = pneg %p219
        %p482 = pneg %p216
        %p483 = pneg %p240
        %p484 = pneg %p237
        %p485 = pneg %p261
        %p486 = pneg %p258
        %p487 = pneg %p282
        %p488 = pneg %p279
        %p489 = pneg %p303
        %p490 = pneg %p300
        %p491 = pneg %p324
        %p492 = pneg %p321
        %p493 = pneg %p352
        %p494 = pneg %p349
        %s495 = sand.u32 %s339, 1
        %s496 = scalar_lea.sflag [#allocation4], %s495
        %s497 = sand.u32 %s339, 1
        %s498 = smul.addr %s497, 8
        %s499 = scalar_lea.vmem [#allocation5], %s498
        %p500 = scmp.lt.s32.totalorder %s34, 1
        %s501 = scalar_select %p500, %s34, 1
        %p502 = scmp.lt.s32.totalorder %s35, 1
        %s503 = scalar_select %p502, %s35, 1
        %s504 = smul.addr %s501, 2
        %s505 = sadd.s32 %s503, %s504
        %s506 = smul.addr %s505, 8
        %s507 = scalar_lea.vmem %s0, %s506
        %v508 = vld [vmem:[%s507] sm:$0xff]
        %v509 = vld [vmem:[%s449] sm:$0xff]
        %v510 = vld [vmem:[%s449 + $0x8] sm:$0xff]
        %v511 = vld [vmem:[%s2] sm:$0xff]
        %513 = vrot.lane.b32.xlu0 %v509, 1
        %v514 = vpop.permute.xlu0 %513
        %517 = vrot.lane.b32.xlu0 %v508, 17
        %v518 = vpop.permute.xlu0 %517
        %521 = vrot.lane.b32.xlu0 %v510, 17
        %v522 = vpop.permute.xlu0 %521
        %vm524 = vcmask 7168
        %v525 = vsel %vm524, 0.0, %v514
        %vm526 = vcmask 138240
        %v527 = vsel %vm526, %v525, %v518
        %v528 = vsel %vm526, %v518, %v522
        %vm529 = vcmask 269312
        %v530 = vsel %vm529, %v528, 0.0
        %v531 = vld [vmem:[%s3] sm:$0xff]
        %533 = vset.pattern.permute.xlu0 0
        %534 = vperm.xlu0 %533, %v531
        %v535 = vpop.permute.xlu0 %534
        %v537 = vmul.f32 %v527, %v535
        %v538 = vmul.f32 %v530, %v535
        %v539 = vld [vmem:[%s4] sm:$0xff]
        %541 = vset.pattern.permute.xlu0 0
        %542 = vperm.xlu0 %541, %v539
        %v543 = vpop.permute.xlu0 %542
        %v545 = vadd.f32 %v537, %v543
        %v546 = vadd.f32 %v538, %v543
        %v547 = vmax.f32 %v545, 0.0
        %v548 = vmax.f32 %v546, 0.0
        %v549 = vld [vmem:[%s5] sm:$0xf]
        %551 = vset.pattern.permute.xlu0 0
        %552 = vperm.xlu0 %551, %v549
        %v553 = vpop.permute.xlu0 %552
        %v555 = vlaneseq
        %v556 = vshrl.u32 %v555, 7
        %v557 = vsub.s32 0, %v556
        %v558 = vrot.slane %v547, %v557
        %v559 = vlaneseq
        %v560 = vshrl.u32 %v559, 7
        %v561 = vsub.s32 0, %v560
        %v562 = vrot.slane %v548, %v561
        %v563 = vmul.f32 %v553, %v558
        %v564 = vmul.f32 %v553, %v562
        %565 = vset.pattern.permute.xlu0 1
        %566 = vperm.xlu0 %565, %v549
        %v567 = vpop.permute.xlu0 %566
        %v569 = vlaneseq
        %v570 = vshrl.u32 %v569, 7
        %v571 = vsub.s32 1, %v570
        %v572 = vrot.slane %v547, %v571
        %v573 = vlaneseq
        %v574 = vshrl.u32 %v573, 7
        %v575 = vsub.s32 1, %v574
        %v576 = vrot.slane %v548, %v575
        %v577 = vmul.f32 %v567, %v572
        %v578 = vmul.f32 %v567, %v576
        %v579 = vadd.f32 %v563, %v577
        %v580 = vadd.f32 %v564, %v578
        %581 = vset.pattern.permute.xlu0 2
        %582 = vperm.xlu0 %581, %v549
        %v583 = vpop.permute.xlu0 %582
        %v585 = vlaneseq
        %v586 = vshrl.u32 %v585, 7
        %v587 = vsub.s32 2, %v586
        %v588 = vrot.slane %v547, %v587
        %v589 = vlaneseq
        %v590 = vshrl.u32 %v589, 7
        %v591 = vsub.s32 2, %v590
        %v592 = vrot.slane %v548, %v591
        %v593 = vmul.f32 %v583, %v588
        %v594 = vmul.f32 %v583, %v592
        %v595 = vadd.f32 %v579, %v593
        %v596 = vadd.f32 %v580, %v594
        %597 = vset.pattern.permute.xlu0 3
        %598 = vperm.xlu0 %597, %v549
        %v599 = vpop.permute.xlu0 %598
        %v601 = vlaneseq
        %v602 = vshrl.u32 %v601, 7
        %v603 = vsub.s32 3, %v602
        %v604 = vrot.slane %v547, %v603
        %v605 = vlaneseq
        %v606 = vshrl.u32 %v605, 7
        %v607 = vsub.s32 3, %v606
        %v608 = vrot.slane %v548, %v607
        %v609 = vmul.f32 %v599, %v604
        %v610 = vmul.f32 %v599, %v608
        %v611 = vadd.f32 %v595, %v609
        %v612 = vadd.f32 %v596, %v610
        %613 = vset.pattern.permute.xlu0 4
        %614 = vperm.xlu0 %613, %v549
        %v615 = vpop.permute.xlu0 %614
        %v617 = vlaneseq
        %v618 = vshrl.u32 %v617, 7
        %v619 = vsub.s32 4, %v618
        %v620 = vrot.slane %v547, %v619
        %v621 = vlaneseq
        %v622 = vshrl.u32 %v621, 7
        %v623 = vsub.s32 4, %v622
        %v624 = vrot.slane %v548, %v623
        %v625 = vmul.f32 %v615, %v620
        %v626 = vmul.f32 %v615, %v624
        %v627 = vadd.f32 %v611, %v625
        %v628 = vadd.f32 %v612, %v626
        %629 = vset.pattern.permute.xlu0 5
        %630 = vperm.xlu0 %629, %v549
        %v631 = vpop.permute.xlu0 %630
        %v633 = vlaneseq
        %v634 = vshrl.u32 %v633, 7
        %v635 = vsub.s32 5, %v634
        %v636 = vrot.slane %v547, %v635
        %v637 = vlaneseq
        %v638 = vshrl.u32 %v637, 7
        %v639 = vsub.s32 5, %v638
        %v640 = vrot.slane %v548, %v639
        %v641 = vmul.f32 %v631, %v636
        %v642 = vmul.f32 %v631, %v640
        %v643 = vadd.f32 %v627, %v641
        %v644 = vadd.f32 %v628, %v642
        %645 = vset.pattern.permute.xlu0 6
        %646 = vperm.xlu0 %645, %v549
        %v647 = vpop.permute.xlu0 %646
        %v649 = vlaneseq
        %v650 = vshrl.u32 %v649, 7
        %v651 = vsub.s32 6, %v650
        %v652 = vrot.slane %v547, %v651
        %v653 = vlaneseq
        %v654 = vshrl.u32 %v653, 7
        %v655 = vsub.s32 6, %v654
        %v656 = vrot.slane %v548, %v655
        %v657 = vmul.f32 %v647, %v652
        %v658 = vmul.f32 %v647, %v656
        %v659 = vadd.f32 %v643, %v657
        %v660 = vadd.f32 %v644, %v658
        %661 = vset.pattern.permute.xlu0 7
        %662 = vperm.xlu0 %661, %v549
        %v663 = vpop.permute.xlu0 %662
        %v665 = vlaneseq
        %v666 = vshrl.u32 %v665, 7
        %v667 = vsub.s32 7, %v666
        %v668 = vrot.slane %v547, %v667
        %v669 = vlaneseq
        %v670 = vshrl.u32 %v669, 7
        %v671 = vsub.s32 7, %v670
        %v672 = vrot.slane %v548, %v671
        %v673 = vmul.f32 %v663, %v668
        %v674 = vmul.f32 %v663, %v672
        %v675 = vadd.f32 %v659, %v673
        %v676 = vadd.f32 %v660, %v674
        %v677 = vld [vmem:[%s6] sm:$0xf]
        %679 = vset.pattern.permute.xlu0 0
        %680 = vperm.xlu0 %679, %v677
        %v681 = vpop.permute.xlu0 %680
        %v683 = vmul.f32 %v675, %v681
        %v684 = vmul.f32 %v676, %v681
        %v685 = vld [vmem:[%s7] sm:$0xf]
        %687 = vset.pattern.permute.xlu0 0
        %688 = vperm.xlu0 %687, %v685
        %v689 = vpop.permute.xlu0 %688
        %v691 = vadd.f32 %v683, %v689
        %v692 = vadd.f32 %v684, %v689
        %v693 = vmax.f32 %v691, 0.0
        %v694 = vmax.f32 %v692, 0.0
        %p695 = scmp.gt.s32.totalorder %s35, 0
        %s696 = scalar_select %p695, 1.0, 0.0
        %p697 = scmp.lt.s32.totalorder %s35, 1
        %s698 = scalar_select %p697, 1.0, 0.0
        %s699 = ssub.f32 1.0, %s696
        %v700 = vstv %s699
        %v701 = vmul.f32 %v700, %v511
        %v702 = vsub.f32 1.0, %v701
        %s703 = ssub.f32 1.0, %s698
        %v704 = vstv %s703
        %v705 = vmul.f32 %v704, %v511
        %v707 = vrot.slane %v705, 5
        %v708 = vrot.slane %v707, 4
        %v710 = vsub.f32 %v702, %v708
        %v712 = vlaneseq
        %v713 = vshrl.u32 %v712, 7
        %v714 = vsub.s32 2, %v713
        %v715 = vrot.slane %v710, %v714
        %v716 = vlaneseq
        %v717 = vshrl.u32 %v716, 7
        %v718 = vsub.s32 6, %v717
        %v719 = vrot.slane %v710, %v718
        %v722 = vlaneseq
        %v723 = vshrl.u32 %v722, 7
        %v724 = vsub.s32 2, %v723
        %v725 = vrot.slane %v715, %v724
        %v726 = vlaneseq
        %v727 = vshrl.u32 %v726, 7
        %v728 = vsub.s32 2, %v727
        %v729 = vrot.slane %v719, %v728
        %v730 = vmul.f32 %v693, %v725
        %v731 = vmul.f32 %v694, %v729
        %v733 = vlaneseq
        %v734 = vshrl.u32 %v733, 7
        %v735 = vsub.s32 0, %v734
        %v736 = vrot.slane %v511, %v735
        %v737 = vlaneseq
        %v738 = vshrl.u32 %v737, 7
        %v739 = vsub.s32 4, %v738
        %v740 = vrot.slane %v511, %v739
        %v743 = vlaneseq
        %v744 = vshrl.u32 %v743, 7
        %v745 = vsub.s32 0, %v744
        %v746 = vrot.slane %v736, %v745
        %v747 = vlaneseq
        %v748 = vshrl.u32 %v747, 7
        %v749 = vsub.s32 0, %v748
        %v750 = vrot.slane %v740, %v749
        %v751 = vmul.f32 %v730, %v746
        %v752 = vmul.f32 %v731, %v750
        %v753 = vlaneseq
        %v754 = vshrl.u32 %v753, 7
        %v755 = vsub.s32 1, %v754
        %v756 = vrot.slane %v511, %v755
        %v757 = vlaneseq
        %v758 = vshrl.u32 %v757, 7
        %v759 = vsub.s32 5, %v758
        %v760 = vrot.slane %v511, %v759
        %v763 = vlaneseq
        %v764 = vshrl.u32 %v763, 7
        %v765 = vsub.s32 1, %v764
        %v766 = vrot.slane %v756, %v765
        %v767 = vlaneseq
        %v768 = vshrl.u32 %v767, 7
        %v769 = vsub.s32 1, %v768
        %v770 = vrot.slane %v760, %v769
        %v771 = vmul.f32 %v730, %v766
        %v772 = vmul.f32 %v731, %v770
        %v773 = vld [vmem:[%s8] sm:$0xf]
        %775 = vset.pattern.permute.xlu0 4
        %776 = vperm.xlu0 %775, %v773
        %v777 = vpop.permute.xlu0 %776
        %v779 = vmul.f32 %v730, %v777
        %v780 = vmul.f32 %v731, %v777
        %781 = vset.pattern.permute.xlu0 0
        %782 = vperm.xlu0 %781, %v773
        %v783 = vpop.permute.xlu0 %782
        %v785 = vmul.f32 %v751, %v783
        %787 = vrot.lane.b32.xlu0 %v785, 17
        %v788 = vpop.permute.xlu0 %787
        %v790 = vadd.f32 %v779, %v788
        %v791 = vadd.f32 %v780, %v788
        %792 = vset.pattern.permute.xlu0 1
        %793 = vperm.xlu0 %792, %v773
        %v794 = vpop.permute.xlu0 %793
        %v796 = vmul.f32 %v730, %v794
        %v797 = vmul.f32 %v731, %v794
        %800 = vrot.lane.b32.xlu0 %v796, 16
        %v801 = vpop.permute.xlu0 %800
        %802 = vrot.lane.b32.xlu0 %v797, 16
        %v803 = vpop.permute.xlu0 %802
        %vm804 = vcmask 130048
        %v805 = vsel %vm804, %v801, %v803
        %v808 = vadd.f32 %v790, %v801
        %v809 = vadd.f32 %v791, %v805
        %810 = vset.pattern.permute.xlu0 2
        %811 = vperm.xlu0 %810, %v773
        %v812 = vpop.permute.xlu0 %811
        %v814 = vmul.f32 %v771, %v812
        %v815 = vmul.f32 %v772, %v812
        %818 = vrot.lane.b32.xlu0 %v814, 15
        %v819 = vpop.permute.xlu0 %818
        %820 = vrot.lane.b32.xlu0 %v815, 15
        %v821 = vpop.permute.xlu0 %820
        %vm822 = vcmask 121856
        %v823 = vsel %vm822, %v819, %v821
        %v826 = vadd.f32 %v808, %v819
        %v827 = vadd.f32 %v809, %v823
        %828 = vset.pattern.permute.xlu0 3
        %829 = vperm.xlu0 %828, %v773
        %v830 = vpop.permute.xlu0 %829
        %v832 = vmul.f32 %v751, %v830
        %v833 = vmul.f32 %v752, %v830
        %836 = vrot.lane.b32.xlu0 %v832, 1
        %v837 = vpop.permute.xlu0 %836
        %838 = vrot.lane.b32.xlu0 %v833, 1
        %v839 = vpop.permute.xlu0 %838
        %v840 = vsel %vm524, %v837, %v839
        %v843 = vadd.f32 %v826, %v837
        %v844 = vadd.f32 %v827, %v840
        %845 = vset.pattern.permute.xlu0 5
        %846 = vperm.xlu0 %845, %v773
        %v847 = vpop.permute.xlu0 %846
        %v849 = vmul.f32 %v771, %v847
        %v850 = vmul.f32 %v772, %v847
        %853 = vrot.lane.b32.xlu0 %v849, 127
        %v854 = vpop.permute.xlu0 %853
        %855 = vrot.lane.b32.xlu0 %v850, 127
        %v856 = vpop.permute.xlu0 %855
        %vm857 = vcmask 1039360
        %v858 = vsel %vm857, %v854, %v856
        %v861 = vadd.f32 %v843, %v858
        %v862 = vadd.f32 %v844, %v856
        %863 = vset.pattern.permute.xlu0 6
        %864 = vperm.xlu0 %863, %v773
        %v865 = vpop.permute.xlu0 %864
        %v867 = vmul.f32 %v751, %v865
        %v868 = vmul.f32 %v752, %v865
        %871 = vrot.lane.b32.xlu0 %v867, 113
        %v872 = vpop.permute.xlu0 %871
        %873 = vrot.lane.b32.xlu0 %v868, 113
        %v874 = vpop.permute.xlu0 %873
        %vm875 = vcmask 924672
        %v876 = vsel %vm875, %v872, %v874
        %v879 = vadd.f32 %v861, %v876
        %v880 = vadd.f32 %v862, %v874
        %881 = vset.pattern.permute.xlu0 7
        %882 = vperm.xlu0 %881, %v773
        %v883 = vpop.permute.xlu0 %882
        %v885 = vmul.f32 %v730, %v883
        %v886 = vmul.f32 %v731, %v883
        %889 = vrot.lane.b32.xlu0 %v885, 112
        %v890 = vpop.permute.xlu0 %889
        %891 = vrot.lane.b32.xlu0 %v886, 112
        %v892 = vpop.permute.xlu0 %891
        %vm893 = vcmask 916480
        %v894 = vsel %vm893, %v890, %v892
        %v897 = vadd.f32 %v879, %v894
        %v898 = vadd.f32 %v880, %v892
        %899 = vset.pattern.permute.xlu0 8
        %900 = vperm.xlu0 %899, %v773
        %v901 = vpop.permute.xlu0 %900
        %v903 = vmul.f32 %v771, %v901
        %v904 = vmul.f32 %v772, %v901
        %907 = vrot.lane.b32.xlu0 %v903, 111
        %v908 = vpop.permute.xlu0 %907
        %909 = vrot.lane.b32.xlu0 %v904, 111
        %v910 = vpop.permute.xlu0 %909
        %vm911 = vcmask 908288
        %v912 = vsel %vm911, %v908, %v910
        %v915 = vadd.f32 %v897, %v912
        %v916 = vadd.f32 %v898, %v910
        %v917 = vld [vmem:[%s9] sm:$0xf]
        %919 = vset.pattern.permute.xlu0 0
        %920 = vperm.xlu0 %919, %v917
        %v921 = vpop.permute.xlu0 %920
        %v923 = vmul.f32 %v915, %v921
        %v924 = vmul.f32 %v916, %v921
        %v925 = vld [vmem:[%s10] sm:$0xf]
        %927 = vset.pattern.permute.xlu0 0
        %928 = vperm.xlu0 %927, %v925
        %v929 = vpop.permute.xlu0 %928
        %v931 = vadd.f32 %v923, %v929
        %v932 = vadd.f32 %v924, %v929
        %v933 = vmax.f32 %v931, 0.0
        %v934 = vmax.f32 %v932, 0.0
        %v935 = vld [vmem:[%s11] sm:$0xff]
        %937 = vset.pattern.permute.xlu0 0
        %938 = vperm.xlu0 %937, %v935
        %v939 = vpop.permute.xlu0 %938
        %v941 = vlaneseq
        %v942 = vshrl.u32 %v941, 7
        %v943 = vsub.s32 0, %v942
        %v944 = vrot.slane %v933, %v943
        %v945 = vlaneseq
        %v946 = vshrl.u32 %v945, 7
        %v947 = vsub.s32 0, %v946
        %v948 = vrot.slane %v934, %v947
        %v949 = vmul.f32 %v939, %v944
        %v950 = vmul.f32 %v939, %v948
        %951 = vset.pattern.permute.xlu0 1
        %952 = vperm.xlu0 %951, %v935
        %v953 = vpop.permute.xlu0 %952
        %v955 = vlaneseq
        %v956 = vshrl.u32 %v955, 7
        %v957 = vsub.s32 1, %v956
        %v958 = vrot.slane %v933, %v957
        %v959 = vlaneseq
        %v960 = vshrl.u32 %v959, 7
        %v961 = vsub.s32 1, %v960
        %v962 = vrot.slane %v934, %v961
        %v963 = vmul.f32 %v953, %v958
        %v964 = vmul.f32 %v953, %v962
        %v965 = vadd.f32 %v949, %v963
        %v966 = vadd.f32 %v950, %v964
        %967 = vset.pattern.permute.xlu0 2
        %968 = vperm.xlu0 %967, %v935
        %v969 = vpop.permute.xlu0 %968
        %v971 = vlaneseq
        %v972 = vshrl.u32 %v971, 7
        %v973 = vsub.s32 2, %v972
        %v974 = vrot.slane %v933, %v973
        %v975 = vlaneseq
        %v976 = vshrl.u32 %v975, 7
        %v977 = vsub.s32 2, %v976
        %v978 = vrot.slane %v934, %v977
        %v979 = vmul.f32 %v969, %v974
        %v980 = vmul.f32 %v969, %v978
        %v981 = vadd.f32 %v965, %v979
        %v982 = vadd.f32 %v966, %v980
        %983 = vset.pattern.permute.xlu0 3
        %984 = vperm.xlu0 %983, %v935
        %v985 = vpop.permute.xlu0 %984
        %v987 = vlaneseq
        %v988 = vshrl.u32 %v987, 7
        %v989 = vsub.s32 3, %v988
        %v990 = vrot.slane %v933, %v989
        %v991 = vlaneseq
        %v992 = vshrl.u32 %v991, 7
        %v993 = vsub.s32 3, %v992
        %v994 = vrot.slane %v934, %v993
        %v995 = vmul.f32 %v985, %v990
        %v996 = vmul.f32 %v985, %v994
        %v997 = vadd.f32 %v981, %v995
        %v998 = vadd.f32 %v982, %v996
        %v999 = vld [vmem:[%s12] sm:$0xff]
        %1001 = vset.pattern.permute.xlu0 0
        %1002 = vperm.xlu0 %1001, %v999
        %v1003 = vpop.permute.xlu0 %1002
        %v1005 = vadd.f32 %v997, %v1003
        %v1006 = vadd.f32 %v998, %v1003
        %v1007 = vadd.f32 %v1005, %v518
        %v1008 = vadd.f32 %v1006, %v518
        %1011 = vrot.lane.b32.xlu0 %v1007, 111
        %v1012 = vpop.permute.xlu0 %1011
        %1013 = vrot.lane.b32.xlu0 %v1008, 111
        %v1014 = vpop.permute.xlu0 %1013
        %v1015 = vsel %vm911, %v1012, %v1014
        %1017 = vst [vmem:[%s499] sm:$0xff] %v1015
        %s1018 = sand.u32 %s339, 1
        %s1019 = scalar_lea.sflag [#allocation4], %s1018
        %s1020 = sand.u32 %s339, 1
        %s1021 = smul.addr %s1020, 8
        %s1022 = scalar_lea.vmem [#allocation5], %s1021
        // Predicated region
        $region77: #{tpu_custom_call.1} parent=71 // pred_check
          %p1023 = pneg %p349
        $region78: #{tpu_custom_call.1} parent=71 // pred_check_branch
          %1025 = sbr.rel (%p1023) target = $region80
        $region79: #{tpu_custom_call.1} parent=71 // pred_region
          %s1027 = ssub.s32 128, 128
          %1028 = vsyncadd %s1019, %s1027
          %s1029 = smul.addr %s34, 2
          %s1030 = sadd.s32 %s35, %s1029
          %s1031 = smul.addr %s1030, 128
          %s1032 = scalar_lea.hbm %s13, %s1031
          %s1034 = sshll.u32 %s1022, 4
          %s1035 = int_to_ptr.vmem [resolvable:$true] %s1034
          %1037 = dma.vmem_to_hbm [thread:$0]  %s1035, 128, %s1032, %s1019
        $region80: #{tpu_custom_call.1} parent=71 // pred_fallthru
          _
      $region72: #{tpu_custom_call.1} parent=5 // pred_fallthru
        _
      %p1038 = scmp.le.s32.totalorder 2, %s25
      // Predicated region
      $region81: #{tpu_custom_call.1} parent=5 // pred_check
        %p1039 = pneg %p1038
      $region82: #{tpu_custom_call.1} parent=5 // pred_check_branch
        %1041 = sbr.rel (%p1039) target = $region84
      $region83: #{tpu_custom_call.1} parent=5 // pred_region
        %s1042 = ssub.s32 %s25, 2
        // Predicated region
        $region85: #{tpu_custom_call.1} parent=83 // pred_check
          %p1043 = pneg %p355
        $region86: #{tpu_custom_call.1} parent=83 // pred_check_branch
          %1045 = sbr.rel (%p1043) target = $region88
        $region87: #{tpu_custom_call.1} parent=83 // pred_region
          %s1046 = sand.u32 %s340, 1
          %s1047 = scalar_lea.sflag [#allocation4], %s1046
          %s1048 = sand.u32 %s340, 1
          %s1049 = smul.addr %s1048, 8
          %s1050 = scalar_lea.vmem [#allocation5], %s1049
          %1051 = dma.done %s1047, 128
        $region88: #{tpu_custom_call.1} parent=83 // pred_fallthru
          _
      $region84: #{tpu_custom_call.1} parent=5 // pred_fallthru
        _
    $region6: #{tpu_custom_call.1} parent=1 // loop_footer
      %s29 = sadd.s32 1, %s25
    $region7: #{tpu_custom_call.1} parent=1 // loop_footer_branch
      %24 = sbr.rel target = $region3
    $region8: #{tpu_custom_call.1} parent=1 // loop_exit
      _
    %1052 = vsyncpa [#allocation3], 1
    %s1053 = scalar_lea.sflag [#allocation3], 1
    %1054 = vsyncpa %s1053, 1
    %1055 = vsyncpa [#allocation4], 1
    %s1056 = scalar_lea.sflag [#allocation4], 1
    %1057 = vsyncpa %s1056, 1

</llo_original>
